<compile_context>
chip_gen: v7x
topology: tpu7x:2x2x1
jax: 0.10.0
libtpu: 0.0.40
codegen_flags: <defaults>
</compile_context>

<pallas_src>
import functools

import jax
import jax.numpy as jnp
from jax.experimental import pallas as pl
from jax.experimental.pallas import tpu as pltpu


def _round_down_mult(x, m):
    return max(m, (x // m) * m)


# --------------------------------------------------------------------------------------
# Kernel 1: y reduction over the embed dim, tiled over the batch axis.
# --------------------------------------------------------------------------------------
def _y_train_kernel(q_ref, k_ref, y_ref):
    # q_ref, k_ref: (tb, S, D); y_ref: (tb, S)
    y_ref[...] = jnp.sum(k_ref[...] * q_ref[...], axis=-1).astype(y_ref.dtype)


def _y_eval_kernel(q_ref, klast_ref, y_ref):
    # q_ref: (tb, S, D); klast_ref: (tb, 1, D) (last key row, selected in the wrapper)
    y_ref[...] = jnp.sum(klast_ref[...] * q_ref[...], axis=-1).astype(y_ref.dtype)


# --------------------------------------------------------------------------------------
# Kernel 2: fused mask construction + causal mask + multiply, lane-dense tiled store.
# --------------------------------------------------------------------------------------
def _mask_store_kernel(y_ref, qm_ref, km_ref, o_ref, *, causal):
    # y_ref: (yr, tk) with yr == tq (B == S) or yr == 1 (B == 1)
    # qm_ref: (bb, tq, 1); km_ref: (bb, 1, tk); o_ref: (bb, tq, tk)
    bb, tq, tk = o_ref.shape
    y = y_ref[...]                                           # (yr, tk), float32

    if causal is not None:
        # Batch-independent causal select, hoisted out of the per-b broadcast.
        qi = pl.program_id(0)
        kj = pl.program_id(1)
        ri = jax.lax.broadcasted_iota(jnp.int32, (tq, tk), 0)
        ci = jax.lax.broadcasted_iota(jnp.int32, (tq, tk), 1)
        # torch.tril(mask, diagonal=causal): keep where (col - row) <= causal.
        # Tile offsets folded into the scalar side of the comparison.
        limit = causal - (kj * tk - qi * tq)
        y = jnp.where((ci - ri) <= limit, y, 0.0)            # (tq, tk)

    keep = (qm_ref[...] != 0) & (km_ref[...] != 0)           # (bb, tq, tk) via broadcast
    o_ref[...] = jnp.where(keep, y[None], 0.0).astype(o_ref.dtype)


# --------------------------------------------------------------------------------------
# Wrapper
# --------------------------------------------------------------------------------------
def dot_head_forward(query, key, value, q_mask, k_mask, causal=None, training=True):
    """Pallas implementation of DotHead.forward. `value` is unused (as in the PyTorch module)."""
    del value
    B, S, D = query.shape
    assert B == S or B == 1, (
        "broadcast of y (B,S) against mask (B,S,S) requires B == S_q or B == 1 "
        "(same constraint as the PyTorch reference)."
    )

    # ---------------- stage 1: y (B, S), batch-tiled -------------------------------
    # Keep each (tb, S, D) input block <= ~4 MiB so two double-buffered inputs stay
    # well under the 16 MiB (v5e) / 32 MiB scoped-VMEM defaults.
    per_row_bytes = S * D * 4
    if B * per_row_bytes <= 4 * 1024 * 1024 or B <= 8:
        tb = B
    else:
        tb = _round_down_mult((4 * 1024 * 1024) // per_row_bytes, 8)
    nb1 = pl.cdiv(B, tb)

    stage1_params = pltpu.CompilerParams(
        dimension_semantics=("parallel",),
        vmem_limit_bytes=32 * 1024 * 1024,
    )

    if training:
        y = pl.pallas_call(
            _y_train_kernel,
            out_shape=jax.ShapeDtypeStruct((B, S), jnp.float32),
            grid=(nb1,),
            in_specs=[
                pl.BlockSpec((tb, S, D), lambda b: (b, 0, 0)),
                pl.BlockSpec((tb, S, D), lambda b: (b, 0, 0)),
            ],
            out_specs=pl.BlockSpec((tb, S), lambda b: (b, 0)),
            compiler_params=stage1_params,
        )(query, key)
    else:
        # Select the last key row in the wrapper: the kernel never DMAs the full key.
        key_last = key[:, S - 1:S, :]                        # (B, 1, D)
        y = pl.pallas_call(
            _y_eval_kernel,
            out_shape=jax.ShapeDtypeStruct((B, S), jnp.float32),
            grid=(nb1,),
            in_specs=[
                pl.BlockSpec((tb, S, D), lambda b: (b, 0, 0)),
                pl.BlockSpec((tb, 1, D), lambda b: (b, 0, 0)),
            ],
            out_specs=pl.BlockSpec((tb, S), lambda b: (b, 0)),
            compiler_params=stage1_params,
        )(query, key_last)

    # ---------------- stage 2: fused masked output, written directly as (B, S, S) ----
    # Lane-dense tk (multiple of 128 or full extent), tq multiple of 8 (or full extent).
    tk = S if S <= 1024 else 1024
    tq_budget = _round_down_mult((2 * 1024 * 1024) // (4 * tk), 8)   # y tile <= ~2 MiB
    tq = S if S <= tq_budget else tq_budget
    # ~8 MiB output tile; double-buffered working set stays < ~24 MiB (per-TC safe on v7x).
    bb = max(1, min(B, (8 * 1024 * 1024) // (4 * tq * tk)))

    nq = pl.cdiv(S, tq)
    nk = pl.cdiv(S, tk)
    nb2 = pl.cdiv(B, bb)

    qm3 = q_mask.reshape(B, S, 1)
    km3 = k_mask.reshape(B, 1, S)

    # PyTorch right-aligned broadcast:
    #   B == S: out[b, i, j] = y[i, j] * mask[b, i, j]
    #   B == 1: out[b, i, j] = y[0, j] * mask[b, i, j]  (broadcast handled in-kernel, no
    #           materialized (S, S) table)
    if B == S:
        y_rows_blk = tq
        y_index = lambda qi, kj, b: (qi, kj)
    else:  # B == 1
        y_rows_blk = 1
        y_index = lambda qi, kj, b: (0, kj)

    kernel = functools.partial(_mask_store_kernel, causal=causal)

    out = pl.pallas_call(
        kernel,
        out_shape=jax.ShapeDtypeStruct((B, S, S), jnp.float32),
        grid=(nq, nk, nb2),                                   # b innermost: y tile DMA'd once
        in_specs=[
            pl.BlockSpec((y_rows_blk, tk), y_index),                      # y table
            pl.BlockSpec((bb, tq, 1), lambda qi, kj, b: (b, qi, 0)),      # q_mask column
            pl.BlockSpec((bb, 1, tk), lambda qi, kj, b: (b, 0, kj)),      # k_mask row
        ],
        out_specs=pl.BlockSpec((bb, tq, tk), lambda qi, kj, b: (b, qi, kj)),
        compiler_params=pltpu.CompilerParams(
            dimension_semantics=("parallel", "parallel", "arbitrary"),
            vmem_limit_bytes=32 * 1024 * 1024,
        ),
    )(y, qm3, km3)

    return out


# --------------------------------------------------------------------------------------
# Pure-JAX reference mirroring the PyTorch math.
# --------------------------------------------------------------------------------------
def dot_head_reference(query, key, q_mask, k_mask, causal=None, training=True):
    if training:
        y = jnp.sum(key * query, axis=-1)
    else:
        y = jnp.sum(key[:, -1:, :] * query, axis=-1)
    attn_mask = jnp.matmul(q_mask[:, :, None], k_mask[:, None, :]) != 0
    if causal is not None:
        S_q, S_k = attn_mask.shape[1], attn_mask.shape[2]
        ri = jnp.arange(S_q)[:, None]
        ci = jnp.arange(S_k)[None, :]
        attn_mask = jnp.logical_and(attn_mask, (ci - ri) <= causal)
    return y * attn_mask.astype(jnp.float32)


if __name__ == "__main__":
    # Small shapes. B == S so the PyTorch broadcast of y(B,S) against mask(B,S,S) is valid.
    B, S, D = 8, 8, 32
    key0 = jax.random.PRNGKey(0)
    k_q, k_k, k_v, k_qm, k_km, k_wq, k_wk, k_wv = jax.random.split(key0, 8)

    query = jax.random.normal(k_q, (B, S, D), dtype=jnp.float32)
    key_t = jax.random.normal(k_k, (B, S, D), dtype=jnp.float32)
    value = jax.random.normal(k_v, (B, S, D), dtype=jnp.float32)
    q_mask = (jax.random.uniform(k_qm, (B, S)) > 0.2).astype(jnp.float32)
    k_mask = (jax.random.uniform(k_km, (B, S)) > 0.2).astype(jnp.float32)

    # Deterministic parameter init matching __init__ shapes (xavier-uniform weights, zero bias).
    bound = (6.0 / (D + D)) ** 0.5
    WQ = jax.random.uniform(k_wq, (D, D), minval=-bound, maxval=bound)
    WK = jax.random.uniform(k_wk, (D, D), minval=-bound, maxval=bound)
    WV = jax.random.uniform(k_wv, (D, D), minval=-bound, maxval=bound)
    bQ = bK = bV = jnp.zeros((D,), jnp.float32)
    # TODO(synk): WQ/WK/WV, dropout, sigmoid, softmax, and LeakyReLU are defined in __init__ but
    # never used by DotHead.forward, so they do not appear in the kernels.

    for training, causal in [(True, 0), (True, None), (False, None), (False, 1)]:
        out = dot_head_forward(query, key_t, value, q_mask, k_mask,
                               causal=causal, training=training)
        out = jax.block_until_ready(out)
        ref = dot_head_reference(query, key_t, q_mask, k_mask,
                                 causal=causal, training=training)
        assert out.shape == (B, S, S)
        assert jnp.allclose(out, ref, atol=1e-5, rtol=1e-5), (
            f"mismatch vs reference (training={training}, causal={causal})")

    print("KERNEL_OK")
</pallas_src>

<mosaic_0001>
module attributes {stable_mosaic.version = 11 : i64} {
  func.func @_y_train_kernel(%arg0: i32, %arg1: memref<8x8x32xf32, #tpu.memory_space<vmem>>, %arg2: memref<8x8x32xf32, #tpu.memory_space<vmem>>, %arg3: memref<8x8xf32, #tpu.memory_space<vmem>>) attributes {dimension_semantics = [#tpu.dimension_semantics<parallel>], iteration_bounds = array<i64: 1>, scalar_prefetch = 0 : i64, scratch_operands = 0 : i64, tpu.core_type = #tpu.core_type<tc>, window_params = [{transform_indices = @transform_0, window_bounds = array<i64: 8, 8, 32>}, {transform_indices = @transform_1, window_bounds = array<i64: 8, 8, 32>}, {transform_indices = @transform_2, window_bounds = array<i64: 8, 8>}]} {
    %c0 = arith.constant 0 : index
    %c0_0 = arith.constant 0 : index
    %c0_1 = arith.constant 0 : index
    %0 = vector.load %arg2[%c0, %c0_0, %c0_1] : memref<8x8x32xf32, #tpu.memory_space<vmem>>, vector<8x8x32xf32>
    %c0_2 = arith.constant 0 : index
    %c0_3 = arith.constant 0 : index
    %c0_4 = arith.constant 0 : index
    %1 = vector.load %arg1[%c0_2, %c0_3, %c0_4] : memref<8x8x32xf32, #tpu.memory_space<vmem>>, vector<8x8x32xf32>
    %2 = arith.mulf %0, %1 : vector<8x8x32xf32>
    %cst = arith.constant dense<0.000000e+00> : vector<8x8xf32>
    %3 = vector.multi_reduction <add>, %2, %cst [2] : vector<8x8x32xf32> to vector<8x8xf32>
    %c0_5 = arith.constant 0 : index
    %c0_6 = arith.constant 0 : index
    %4 = vector.load %arg3[%c0_5, %c0_6] : memref<8x8xf32, #tpu.memory_space<vmem>>, vector<8x8xf32>
    tpu.vector_store %arg3[%c0_5, %c0_6], %3 {strides = array<i32>} : memref<8x8xf32, #tpu.memory_space<vmem>>, vector<8x8xf32>,
    return
  }
  func.func @transform_0(%arg0: i32) -> (i32, i32, i32) {
    %c0_i32 = arith.constant 0 : i32
    %c0_i32_0 = arith.constant 0 : i32
    %c0_i32_1 = arith.constant 0 : i32
    return %arg0, %c0_i32, %c0_i32_0 : i32, i32, i32
  }
  func.func @transform_1(%arg0: i32) -> (i32, i32, i32) {
    %c0_i32 = arith.constant 0 : i32
    %c0_i32_0 = arith.constant 0 : i32
    %c0_i32_1 = arith.constant 0 : i32
    return %arg0, %c0_i32, %c0_i32_0 : i32, i32, i32
  }
  func.func @transform_2(%arg0: i32) -> (i32, i32) {
    %c0_i32 = arith.constant 0 : i32
    %c0_i32_0 = arith.constant 0 : i32
    return %arg0, %c0_i32 : i32, i32
  }
}

</mosaic_0001>

<llo_original>
// kernel: tpu_custom_call.1
$region0: #{tpu_custom_call.1}
  #allocation0 [shape = 'u32[]', space=smem, size = 0x4, offset = 0x4, fixed_abs, tag = 'smem constant byte address 0x4 - core index']
  #allocation1 [shape = 'u32[144,128]{1,0:T(1,128)}', space=vmem, size = 0x12000, scoped, tag = 'internal scratch']
  %s0 = inlined_call_operand.hbm [shape: f32[8,8,32], index: 0, kind: input, shape index: {}]
  %s1 = inlined_call_operand.hbm [shape: f32[8,8,32], index: 1, kind: input, shape index: {}]
  %s2 = inlined_call_operand.hbm [shape: f32[8,8], index: 2, kind: output, shape index: {}]
  %s3 = sld [smem:[#allocation0]]
  $region26: #{tpu_custom_call.1} parent=0
    _
  %s5 = ssub.s32 1, %s3
  %s6 = scalar_select 0, %s5, %s3
  $region1: #{tpu_custom_call.1} parent=0
    #allocation2 [shape = 'u8[32768]{0}', space=vmem, size = 0x8000, scoped, tag = 'input window, operand 0, single buffered']
    #allocation3 [shape = 's32[1]{0}', space=sflag, size = 0x4, scoped, tag = 'scoped memory for tpu_custom_call.1']
    #allocation4 [shape = 's32[1]{0}', space=sflag, size = 0x4, scoped, tag = 'scoped memory for tpu_custom_call.1']
    #allocation5 [shape = 'u8[32768]{0}', space=vmem, size = 0x8000, scoped, tag = 'input window, operand 1, single buffered']
    #allocation6 [shape = 's32[1]{0}', space=sflag, size = 0x4, scoped, tag = 'scoped memory for tpu_custom_call.1']
    #allocation7 [shape = 'u8[4096]{0}', space=vmem, size = 0x1000, scoped, tag = 'output window, operand 0, single buffered']
    %7 = vsyncpa [#allocation3], 0
    %8 = vsyncpa [#allocation6], 0
    %9 = vsyncpa [#allocation4], 0
    // Predicated region
    $region2: #{tpu_custom_call.1} parent=1 // pred_check
      _
    $region3: #{tpu_custom_call.1} parent=1 // pred_check_branch
      %11 = sbr.rel (0) target = $region5
    $region4: #{tpu_custom_call.1} parent=1 // pred_region
      %s13 = ssub.s32 1024, 1024
      %14 = vsyncadd [#allocation3], %s13
      %s15 = sshll.u32 [#allocation2], 4
      %s16 = int_to_ptr.vmem [resolvable:$true] %s15
      %21 = dma.hbm_to_vmem [thread:$0]  %s0, 1024, %s16, [#allocation3], 128, 128, 8
    $region5: #{tpu_custom_call.1} parent=1 // pred_fallthru
      _
    // Predicated region
    $region6: #{tpu_custom_call.1} parent=1 // pred_check
      _
    $region7: #{tpu_custom_call.1} parent=1 // pred_check_branch
      %23 = sbr.rel (0) target = $region9
    $region8: #{tpu_custom_call.1} parent=1 // pred_region
      %s25 = ssub.s32 1024, 1024
      %26 = vsyncadd [#allocation6], %s25
      %s27 = sshll.u32 [#allocation5], 4
      %s28 = int_to_ptr.vmem [resolvable:$true] %s27
      %33 = dma.hbm_to_vmem [thread:$0]  %s1, 1024, %s28, [#allocation6], 128, 128, 8
    $region9: #{tpu_custom_call.1} parent=1 // pred_fallthru
      _
    // Predicated region
    $region10: #{tpu_custom_call.1} parent=1 // pred_check
      _
    $region11: #{tpu_custom_call.1} parent=1 // pred_check_branch
      %35 = sbr.rel (0) target = $region13
    $region12: #{tpu_custom_call.1} parent=1 // pred_region
      %36 = dma.done [#allocation3], 1024
    $region13: #{tpu_custom_call.1} parent=1 // pred_fallthru
      _
    // Predicated region
    $region14: #{tpu_custom_call.1} parent=1 // pred_check
      _
    $region15: #{tpu_custom_call.1} parent=1 // pred_check_branch
      %38 = sbr.rel (0) target = $region17
    $region16: #{tpu_custom_call.1} parent=1 // pred_region
      %39 = dma.done [#allocation6], 1024
    $region17: #{tpu_custom_call.1} parent=1 // pred_fallthru
      _
    %v40 = vld [vmem:[#allocation5] sm:$0xff]
    %v41 = vld [vmem:[#allocation5 + $0x8] sm:$0xff]
    %v42 = vld [vmem:[#allocation5 + $0x10] sm:$0xff]
    %v43 = vld [vmem:[#allocation5 + $0x18] sm:$0xff]
    %v44 = vld [vmem:[#allocation5 + $0x20] sm:$0xff]
    %v45 = vld [vmem:[#allocation5 + $0x28] sm:$0xff]
    %v46 = vld [vmem:[#allocation5 + $0x30] sm:$0xff]
    %v47 = vld [vmem:[#allocation5 + $0x38] sm:$0xff]
    %v48 = vld [vmem:[#allocation2] sm:$0xff]
    %v49 = vld [vmem:[#allocation2 + $0x8] sm:$0xff]
    %v50 = vld [vmem:[#allocation2 + $0x10] sm:$0xff]
    %v51 = vld [vmem:[#allocation2 + $0x18] sm:$0xff]
    %v52 = vld [vmem:[#allocation2 + $0x20] sm:$0xff]
    %v53 = vld [vmem:[#allocation2 + $0x28] sm:$0xff]
    %v54 = vld [vmem:[#allocation2 + $0x30] sm:$0xff]
    %v55 = vld [vmem:[#allocation2 + $0x38] sm:$0xff]
    %v56 = vmul.f32 %v40, %v48
    %v57 = vmul.f32 %v41, %v49
    %v58 = vmul.f32 %v42, %v50
    %v59 = vmul.f32 %v43, %v51
    %v60 = vmul.f32 %v44, %v52
    %v61 = vmul.f32 %v45, %v53
    %v62 = vmul.f32 %v46, %v54
    %v63 = vmul.f32 %v47, %v55
    %vm64 = vcmask 261120
    %v65 = vsel %vm64, %v56, 0.0
    %66 = vadd.xlane.f32.xlu0 %v65
    %v67 = vpop.xlane.xlu0 %66
    %v68 = vsel %vm64, %v57, 0.0
    %69 = vadd.xlane.f32.xlu0 %v68
    %v70 = vpop.xlane.xlu0 %69
    %v71 = vsel %vm64, %v58, 0.0
    %72 = vadd.xlane.f32.xlu0 %v71
    %v73 = vpop.xlane.xlu0 %72
    %v74 = vsel %vm64, %v59, 0.0
    %75 = vadd.xlane.f32.xlu0 %v74
    %v76 = vpop.xlane.xlu0 %75
    %v77 = vsel %vm64, %v60, 0.0
    %78 = vadd.xlane.f32.xlu0 %v77
    %v79 = vpop.xlane.xlu0 %78
    %v80 = vsel %vm64, %v61, 0.0
    %81 = vadd.xlane.f32.xlu0 %v80
    %v82 = vpop.xlane.xlu0 %81
    %v83 = vsel %vm64, %v62, 0.0
    %84 = vadd.xlane.f32.xlu0 %v83
    %v85 = vpop.xlane.xlu0 %84
    %v86 = vsel %vm64, %v63, 0.0
    %87 = vadd.xlane.f32.xlu0 %v86
    %v88 = vpop.xlane.xlu0 %87
    %v97 = vlaneseq
    %v98 = vand.u32 %v97, 127
    %v99 = vlaneseq
    %v100 = vshrl.u32 %v99, 7
    %v101 = vsub.s32 %v98, %v100
    %v102 = vrot.slane %v67, %v101
    %v103 = vlaneseq
    %v104 = vshrl.u32 %v103, 7
    %v105 = vsub.s32 %v98, %v104
    %v106 = vrot.slane %v70, %v105
    %v107 = vlaneseq
    %v108 = vshrl.u32 %v107, 7
    %v109 = vsub.s32 %v98, %v108
    %v110 = vrot.slane %v73, %v109
    %v111 = vlaneseq
    %v112 = vshrl.u32 %v111, 7
    %v113 = vsub.s32 %v98, %v112
    %v114 = vrot.slane %v76, %v113
    %v115 = vlaneseq
    %v116 = vshrl.u32 %v115, 7
    %v117 = vsub.s32 %v98, %v116
    %v118 = vrot.slane %v79, %v117
    %v119 = vlaneseq
    %v120 = vshrl.u32 %v119, 7
    %v121 = vsub.s32 %v98, %v120
    %v122 = vrot.slane %v82, %v121
    %v123 = vlaneseq
    %v124 = vshrl.u32 %v123, 7
    %v125 = vsub.s32 %v98, %v124
    %v126 = vrot.slane %v85, %v125
    %v127 = vlaneseq
    %v128 = vshrl.u32 %v127, 7
    %v129 = vsub.s32 %v98, %v128
    %v130 = vrot.slane %v88, %v129
    %vm131 = vcmask 1041409
    %v132 = vsel %vm131, %v106, %v102
    %vm133 = vcmask 1042434
    %v134 = vsel %vm133, %v110, %v132
    %vm135 = vcmask 1043459
    %v136 = vsel %vm135, %v114, %v134
    %vm137 = vcmask 1044484
    %v138 = vsel %vm137, %v118, %v136
    %vm139 = vcmask 1045509
    %v140 = vsel %vm139, %v122, %v138
    %vm141 = vcmask 1046534
    %v142 = vsel %vm141, %v126, %v140
    %vm143 = vcmask 1047559
    %v144 = vsel %vm143, %v130, %v142
    %vm146 = vcmask 64512
    %147 = vst.msk [vmem:[#allocation7] sm:$0xff] %vm146, %v144
    // Predicated region
    $region18: #{tpu_custom_call.1} parent=1 // pred_check
      _
    $region19: #{tpu_custom_call.1} parent=1 // pred_check_branch
      %149 = sbr.rel (0) target = $region21
    $region20: #{tpu_custom_call.1} parent=1 // pred_region
      %s151 = ssub.s32 128, 128
      %152 = vsyncadd [#allocation4], %s151
      %s154 = sshll.u32 [#allocation7], 4
      %s155 = int_to_ptr.vmem [resolvable:$true] %s154
      %157 = dma.vmem_to_hbm [thread:$0]  %s155, 128, %s2, [#allocation4]
    $region21: #{tpu_custom_call.1} parent=1 // pred_fallthru
      _
    // Predicated region
    $region22: #{tpu_custom_call.1} parent=1 // pred_check
      _
    $region23: #{tpu_custom_call.1} parent=1 // pred_check_branch
      %159 = sbr.rel (0) target = $region25
    $region24: #{tpu_custom_call.1} parent=1 // pred_region
      %160 = dma.done [#allocation4], 128
    $region25: #{tpu_custom_call.1} parent=1 // pred_fallthru
      _
    %161 = vsyncpa [#allocation3], 1
    %162 = vsyncpa [#allocation6], 1
    %163 = vsyncpa [#allocation4], 1

</llo_original>
